<compile_context>
chip_gen: v6e
topology: v6e:2x2x1
jax: 0.10.0
libtpu: 0.0.40
codegen_flags: <defaults>
</compile_context>

<pallas_src>
import functools

import jax
import jax.numpy as jnp
from jax.experimental import pallas as pl
from jax.experimental.pallas import tpu as pltpu


def _round_up(x, m):
    return ((x + m - 1) // m) * m


def _mlp_softmax_kernel(x_ref, w1_ref, b1_ref, w2_ref, b2_ref, w3_ref, b3_ref,
                        out_ref, *, n_valid_out):
    # x tile arrives in its native f32; cast to bf16 in VMEM (no extra HBM pass).
    x = x_ref[...].astype(jnp.bfloat16)

    # layer1 + ReLU (dropout p=0.0 is identity)
    h1 = jnp.dot(x, w1_ref[...], preferred_element_type=jnp.float32) + b1_ref[...]
    h1 = jnp.maximum(h1, 0.0).astype(jnp.bfloat16)

    # layer2 + ReLU
    h2 = jnp.dot(h1, w2_ref[...], preferred_element_type=jnp.float32) + b2_ref[...]
    h2 = jnp.maximum(h2, 0.0).astype(jnp.bfloat16)

    # layer3 (lane-padded to 128) + masked softmax(dim=-1), all in f32
    logits = jnp.dot(h2, w3_ref[...], preferred_element_type=jnp.float32) + b3_ref[...]
    lane = jax.lax.broadcasted_iota(jnp.int32, logits.shape, 1)
    logits = jnp.where(lane < n_valid_out, logits, -jnp.inf)

    m = jnp.max(logits, axis=-1, keepdims=True)
    e = jnp.exp(logits - m)                        # padded lanes -> exp(-inf) = 0
    denom = jnp.sum(e, axis=-1, keepdims=True)
    # exact reciprocal so rows sum to 1 (negligible cost in this mem-bound kernel)
    out_ref[...] = (e * pl.reciprocal(denom)).astype(out_ref.dtype)


def evaluator_forward(feats_avg, params, tile_b=512):
    """Run the 'single' Evaluator forward pass with a batch-tiled Pallas kernel.

    feats_avg: [B, feature_dim] float32 (or bfloat16)
    params: dict with w1 [F,256], b1 [1,256], w2 [256,128], b2 [1,128],
            w3 [128,O], b3 [1,O]  (Linear weights pre-transposed to [in,out]).
    """
    B, F = feats_avg.shape
    O = params["w3"].shape[1]
    O_pad = _round_up(max(O, 128), 128)          # lane-dense output block

    # --- batch tiling: no physical padding of x, ragged last block ----------
    # Cap the tile so (a) tiny batches are not over-padded and (b) when the
    # batch is large enough there are >= 2 grid steps for v7x megacore.
    tile_b = max(8, min(tile_b, _round_up(pl.cdiv(B, 2), 8)))
    n_steps = pl.cdiv(B, tile_b)
    grid = (n_steps,)
    B_eff = n_steps * tile_b                      # rows actually streamed

    # --- weights: bf16 operands, f32 biases; pad layer-3 to 128 lanes -------
    w1 = params["w1"].astype(jnp.bfloat16)
    w2 = params["w2"].astype(jnp.bfloat16)
    w3 = jnp.pad(params["w3"], ((0, 0), (0, O_pad - O))).astype(jnp.bfloat16)
    b1 = params["b1"].astype(jnp.float32)
    b2 = params["b2"].astype(jnp.float32)
    b3 = jnp.pad(params["b3"].astype(jnp.float32), ((0, 0), (0, O_pad - O)))

    x_bytes = feats_avg.dtype.itemsize

    def resident(shape):
        # Weight / bias blocks: same block every grid step -> stay VMEM-resident.
        return pl.BlockSpec(shape, lambda i, _s=len(shape): (0,) * _s)

    # --- VMEM budget: pipelined x/out + resident weights + activations ------
    weight_bytes = (F * 256 + 256 * 128 + 128 * O_pad) * 2
    bias_bytes = (256 + 128 + O_pad) * 4
    act_bytes = (
        tile_b * (256 + 128 + 2 * O_pad) * 4      # h1/h2/logits/exp in f32
        + tile_b * (256 + 128) * 2                # bf16 copies of h1/h2
    )
    bytes_needed = (
        2 * tile_b * F * x_bytes                  # x tiles (double-buffered)
        + 2 * tile_b * O_pad * 2                  # out tiles bf16 (double-buffered)
        + 2 * weight_bytes + 2 * bias_bytes       # resident params (2 bufs each)
        + act_bytes
        + (2 << 20)                               # compiler scratch headroom
    )
    # Cap at 48 MiB: safe on v5e/v6e (128 MiB physical) and leaves headroom on
    # v7x (64 MiB physical).
    vmem_limit = int(min(48 << 20, max(16 << 20, 2 * bytes_needed)))

    flops = 2 * B_eff * (F * 256 + 256 * 128 + 128 * O_pad)
    bytes_accessed = (
        B_eff * F * x_bytes                       # x read (native dtype)
        + weight_bytes + bias_bytes               # params (read once, resident)
        + B_eff * O_pad * 2                       # bf16 output write
    )

    out_padded = pl.pallas_call(
        functools.partial(_mlp_softmax_kernel, n_valid_out=O),
        out_shape=jax.ShapeDtypeStruct((B, O_pad), jnp.bfloat16),
        grid_spec=pltpu.PrefetchScalarGridSpec(
            num_scalar_prefetch=0,
            grid=grid,
            in_specs=[
                pl.BlockSpec((tile_b, F), lambda i: (i, 0)),   # x: batch-tiled
                resident(w1.shape),
                resident(b1.shape),
                resident(w2.shape),
                resident(b2.shape),
                resident(w3.shape),
                resident(b3.shape),
            ],
            out_specs=pl.BlockSpec((tile_b, O_pad), lambda i: (i, 0)),
        ),
        compiler_params=pltpu.CompilerParams(
            dimension_semantics=("parallel",),                 # megacore on v7x
            vmem_limit_bytes=vmem_limit,
        ),
        cost_estimate=pl.CostEstimate(
            flops=flops,
            transcendentals=B_eff * O_pad,
            bytes_accessed=bytes_accessed,
        ),
    )(feats_avg, w1, b1, w2, b2, w3, b3)

    # Tiny [B, O] slice + upcast; the padded lanes are exact zeros.
    return out_padded[:, :O].astype(jnp.float32)


def init_params(key, feature_dim, output_dim):
    """Deterministic synthetic parameters (PyTorch Linear shapes, pre-transposed)."""
    k = jax.random.split(key, 6)

    def lin(kw, kb, fan_in, fan_out):
        bound = 1.0 / jnp.sqrt(fan_in)
        w = jax.random.uniform(kw, (fan_in, fan_out), jnp.float32, -bound, bound)
        b = jax.random.uniform(kb, (1, fan_out), jnp.float32, -bound, bound)
        return w, b

    w1, b1 = lin(k[0], k[1], feature_dim, 256)
    w2, b2 = lin(k[2], k[3], 256, 128)
    w3, b3 = lin(k[4], k[5], 128, output_dim)
    return {"w1": w1, "b1": b1, "w2": w2, "b2": b2, "w3": w3, "b3": b3}


def _reference_forward_f32(feats_avg, p):
    h1 = jnp.maximum(feats_avg @ p["w1"] + p["b1"], 0.0)
    h2 = jnp.maximum(h1 @ p["w2"] + p["b2"], 0.0)
    logits = h2 @ p["w3"] + p["b3"]
    return jax.nn.softmax(logits, axis=-1)


def _reference_forward_bf16(feats_avg, p):
    """Reference matching the kernel's bf16-operand / f32-accumulate matmuls."""
    def mm(a, w):
        return jnp.dot(a.astype(jnp.bfloat16), w.astype(jnp.bfloat16),
                       preferred_element_type=jnp.float32)
    h1 = jnp.maximum(mm(feats_avg, p["w1"]) + p["b1"], 0.0)
    h2 = jnp.maximum(mm(h1, p["w2"]) + p["b2"], 0.0)
    logits = mm(h2, p["w3"]) + p["b3"]
    return jax.nn.softmax(logits, axis=-1)


if __name__ == "__main__":
    key = jax.random.PRNGKey(0)
    k_x, k_p = jax.random.split(key)

    B, feature_dim, output_dim = 8, 64, 32
    feats_avg = jax.random.normal(k_x, (B, feature_dim), jnp.float32)
    params = init_params(k_p, feature_dim, output_dim)

    probs = evaluator_forward(feats_avg, params)
    probs = jax.block_until_ready(probs)

    ref_bf16 = _reference_forward_bf16(feats_avg, params)
    ref_f32 = _reference_forward_f32(feats_avg, params)

    assert probs.shape == (B, output_dim)
    # Kernel stores bf16 probabilities: match the bf16-operand reference within
    # bf16 quantization; f32 reference loosely (bf16 matmuls perturb slightly).
    assert jnp.allclose(probs, ref_bf16, atol=1.5e-2, rtol=1.5e-2)
    assert jnp.allclose(probs, ref_f32, atol=3e-2, rtol=3e-2)
    assert jnp.allclose(jnp.sum(probs, axis=-1), 1.0, atol=1.5e-2)

    print("KERNEL_OK")
</pallas_src>

<mosaic_0001>
module attributes {stable_mosaic.version = 11 : i64} {
  func.func @_mlp_softmax_kernel(%arg0: i32, %arg1: memref<8x64xf32, #tpu.memory_space<vmem>>, %arg2: memref<64x256xbf16, #tpu.memory_space<vmem>>, %arg3: memref<1x256xf32, #tpu.memory_space<vmem>>, %arg4: memref<256x128xbf16, #tpu.memory_space<vmem>>, %arg5: memref<1x128xf32, #tpu.memory_space<vmem>>, %arg6: memref<128x128xbf16, #tpu.memory_space<vmem>>, %arg7: memref<1x128xf32, #tpu.memory_space<vmem>>, %arg8: memref<8x128xbf16, #tpu.memory_space<vmem>>) attributes {dimension_semantics = [#tpu.dimension_semantics<parallel>], iteration_bounds = array<i64: 1>, scalar_prefetch = 0 : i64, scratch_operands = 0 : i64, tpu.core_type = #tpu.core_type<tc>, window_params = [{transform_indices = @transform_0, window_bounds = array<i64: 8, 64>}, {pipeline_mode = #tpu.pipeline_mode<synchronous>, transform_indices = @transform_1, window_bounds = array<i64: 64, 256>}, {pipeline_mode = #tpu.pipeline_mode<synchronous>, transform_indices = @transform_2, window_bounds = array<i64: 1, 256>}, {pipeline_mode = #tpu.pipeline_mode<synchronous>, transform_indices = @transform_3, window_bounds = array<i64: 256, 128>}, {pipeline_mode = #tpu.pipeline_mode<synchronous>, transform_indices = @transform_4, window_bounds = array<i64: 1, 128>}, {pipeline_mode = #tpu.pipeline_mode<synchronous>, transform_indices = @transform_5, window_bounds = array<i64: 128, 128>}, {pipeline_mode = #tpu.pipeline_mode<synchronous>, transform_indices = @transform_6, window_bounds = array<i64: 1, 128>}, {transform_indices = @transform_7, window_bounds = array<i64: 8, 128>}]} {
    %c0 = arith.constant 0 : index
    %c0_0 = arith.constant 0 : index
    %0 = vector.load %arg1[%c0, %c0_0] : memref<8x64xf32, #tpu.memory_space<vmem>>, vector<8x64xf32>
    %1 = arith.truncf %0 : vector<8x64xf32> to vector<8x64xbf16>
    %c0_1 = arith.constant 0 : index
    %c0_2 = arith.constant 0 : index
    %2 = vector.load %arg2[%c0_1, %c0_2] : memref<64x256xbf16, #tpu.memory_space<vmem>>, vector<64x256xbf16>
    %cst = arith.constant dense<0.000000e+00> : vector<8x256xf32>
    %3 = tpu.matmul %1, %2, %cst {dimension_numbers = #tpu.dot_dimension_numbers<[1], [0], [0], [1], [0, 0, 1, 1], [], []>} : vector<8x64xbf16>, vector<64x256xbf16>, vector<8x256xf32> -> vector<8x256xf32>
    %c0_3 = arith.constant 0 : index
    %c0_4 = arith.constant 0 : index
    %4 = vector.load %arg3[%c0_3, %c0_4] : memref<1x256xf32, #tpu.memory_space<vmem>>, vector<1x256xf32>
    %5 = vector.broadcast %4 : vector<1x256xf32> to vector<8x256xf32>
    %6 = arith.addf %3, %5 : vector<8x256xf32>
    %cst_5 = arith.constant 0.000000e+00 : f32
    %7 = vector.broadcast %cst_5 : f32 to vector<8x256xf32>
    %8 = arith.maximumf %6, %7 : vector<8x256xf32>
    %9 = arith.truncf %8 : vector<8x256xf32> to vector<8x256xbf16>
    %c0_6 = arith.constant 0 : index
    %c0_7 = arith.constant 0 : index
    %10 = vector.load %arg4[%c0_6, %c0_7] : memref<256x128xbf16, #tpu.memory_space<vmem>>, vector<256x128xbf16>
    %cst_8 = arith.constant dense<0.000000e+00> : vector<8x128xf32>
    %11 = tpu.matmul %9, %10, %cst_8 {dimension_numbers = #tpu.dot_dimension_numbers<[1], [0], [0], [1], [0, 0, 1, 1], [], []>} : vector<8x256xbf16>, vector<256x128xbf16>, vector<8x128xf32> -> vector<8x128xf32>
    %c0_9 = arith.constant 0 : index
    %c0_10 = arith.constant 0 : index
    %12 = vector.load %arg5[%c0_9, %c0_10] : memref<1x128xf32, #tpu.memory_space<vmem>>, vector<1x128xf32>
    %13 = vector.broadcast %12 : vector<1x128xf32> to vector<8x128xf32>
    %14 = arith.addf %11, %13 : vector<8x128xf32>
    %cst_11 = arith.constant 0.000000e+00 : f32
    %15 = vector.broadcast %cst_11 : f32 to vector<8x128xf32>
    %16 = arith.maximumf %14, %15 : vector<8x128xf32>
    %17 = arith.truncf %16 : vector<8x128xf32> to vector<8x128xbf16>
    %c0_12 = arith.constant 0 : index
    %c0_13 = arith.constant 0 : index
    %18 = vector.load %arg6[%c0_12, %c0_13] : memref<128x128xbf16, #tpu.memory_space<vmem>>, vector<128x128xbf16>
    %cst_14 = arith.constant dense<0.000000e+00> : vector<8x128xf32>
    %19 = tpu.matmul %17, %18, %cst_14 {dimension_numbers = #tpu.dot_dimension_numbers<[1], [0], [0], [1], [0, 0, 1, 1], [], []>} : vector<8x128xbf16>, vector<128x128xbf16>, vector<8x128xf32> -> vector<8x128xf32>
    %c0_15 = arith.constant 0 : index
    %c0_16 = arith.constant 0 : index
    %20 = vector.load %arg7[%c0_15, %c0_16] : memref<1x128xf32, #tpu.memory_space<vmem>>, vector<1x128xf32>
    %21 = vector.broadcast %20 : vector<1x128xf32> to vector<8x128xf32>
    %22 = arith.addf %19, %21 : vector<8x128xf32>
    %23 = tpu.iota {dimensions = array<i32: 1>} : vector<8x128xi32>
    %c32_i32 = arith.constant 32 : i32
    %24 = vector.broadcast %c32_i32 : i32 to vector<8x128xi32>
    %25 = arith.cmpi slt, %23, %24 : vector<8x128xi32>
    %cst_17 = arith.constant 0xFF800000 : f32
    %26 = vector.broadcast %cst_17 : f32 to vector<8x128xf32>
    %27 = arith.select %25, %22, %26 : vector<8x128xi1>, vector<8x128xf32>
    %cst_18 = arith.constant dense<0xFF800000> : vector<8xf32>
    %28 = vector.multi_reduction <maximumf>, %27, %cst_18 [1] : vector<8x128xf32> to vector<8xf32>
    %29 = vector.shape_cast %28 : vector<8xf32> to vector<8x1xf32>
    %30 = vector.broadcast %29 : vector<8x1xf32> to vector<8x128xf32>
    %31 = arith.subf %27, %30 : vector<8x128xf32>
    %32 = math.exp %31 : vector<8x128xf32>
    %cst_19 = arith.constant dense<0.000000e+00> : vector<8xf32>
    %33 = vector.multi_reduction <add>, %32, %cst_19 [1] : vector<8x128xf32> to vector<8xf32>
    %34 = vector.shape_cast %33 : vector<8xf32> to vector<8x1xf32>
    %35 = tpu.reciprocal %34 : vector<8x1xf32> -> vector<8x1xf32>
    %36 = vector.broadcast %35 : vector<8x1xf32> to vector<8x128xf32>
    %37 = arith.mulf %32, %36 : vector<8x128xf32>
    %38 = arith.truncf %37 : vector<8x128xf32> to vector<8x128xbf16>
    %c0_20 = arith.constant 0 : index
    %c0_21 = arith.constant 0 : index
    %39 = vector.load %arg8[%c0_20, %c0_21] : memref<8x128xbf16, #tpu.memory_space<vmem>>, vector<8x128xbf16>
    tpu.vector_store %arg8[%c0_20, %c0_21], %38 {strides = array<i32>} : memref<8x128xbf16, #tpu.memory_space<vmem>>, vector<8x128xbf16>,
    return
  }
  func.func @transform_0(%arg0: i32) -> (i32, i32) {
    %c0_i32 = arith.constant 0 : i32
    %c0_i32_0 = arith.constant 0 : i32
    return %arg0, %c0_i32 : i32, i32
  }
  func.func @transform_1(%arg0: i32) -> (i32, i32) {
    %c0_i32 = arith.constant 0 : i32
    %c0_i32_0 = arith.constant 0 : i32
    %c0_i32_1 = arith.constant 0 : i32
    return %c0_i32, %c0_i32_0 : i32, i32
  }
  func.func @transform_2(%arg0: i32) -> (i32, i32) {
    %c0_i32 = arith.constant 0 : i32
    %c0_i32_0 = arith.constant 0 : i32
    %c0_i32_1 = arith.constant 0 : i32
    return %c0_i32, %c0_i32_0 : i32, i32
  }
  func.func @transform_3(%arg0: i32) -> (i32, i32) {
    %c0_i32 = arith.constant 0 : i32
    %c0_i32_0 = arith.constant 0 : i32
    %c0_i32_1 = arith.constant 0 : i32
    return %c0_i32, %c0_i32_0 : i32, i32
  }
  func.func @transform_4(%arg0: i32) -> (i32, i32) {
    %c0_i32 = arith.constant 0 : i32
    %c0_i32_0 = arith.constant 0 : i32
    %c0_i32_1 = arith.constant 0 : i32
    return %c0_i32, %c0_i32_0 : i32, i32
  }
  func.func @transform_5(%arg0: i32) -> (i32, i32) {
    %c0_i32 = arith.constant 0 : i32
    %c0_i32_0 = arith.constant 0 : i32
    %c0_i32_1 = arith.constant 0 : i32
    return %c0_i32, %c0_i32_0 : i32, i32
  }
  func.func @transform_6(%arg0: i32) -> (i32, i32) {
    %c0_i32 = arith.constant 0 : i32
    %c0_i32_0 = arith.constant 0 : i32
    %c0_i32_1 = arith.constant 0 : i32
    return %c0_i32, %c0_i32_0 : i32, i32
  }
  func.func @transform_7(%arg0: i32) -> (i32, i32) {
    %c0_i32 = arith.constant 0 : i32
    %c0_i32_0 = arith.constant 0 : i32
    return %arg0, %c0_i32 : i32, i32
  }
}

</mosaic_0001>

<llo_original>
// kernel: tpu_custom_call.1
$region0: #{tpu_custom_call.1}
  #allocation0 [shape = 'u32[]', space=smem, size = 0x4, offset = 0x4, fixed_abs, tag = 'smem constant byte address 0x4 - core index']
  #allocation1 [shape = 'u32[144,128]{1,0:T(1,128)}', space=vmem, size = 0x12000, scoped, tag = 'internal scratch']
  %s0 = inlined_call_operand.hbm [shape: f32[8,64], index: 0, kind: input, shape index: {}]
  %s1 = inlined_call_operand.hbm [shape: bf16[64,256], index: 1, kind: input, shape index: {}]
  %s2 = inlined_call_operand.vmem [shape: f32[1,256], index: 2, kind: input, shape index: {}]
  %s3 = inlined_call_operand.hbm [shape: bf16[256,128], index: 3, kind: input, shape index: {}]
  %s4 = inlined_call_operand.vmem [shape: f32[1,128], index: 4, kind: input, shape index: {}]
  %s5 = inlined_call_operand.hbm [shape: bf16[128,128], index: 5, kind: input, shape index: {}]
  %s6 = inlined_call_operand.vmem [shape: f32[1,128], index: 6, kind: input, shape index: {}]
  %s7 = inlined_call_operand.hbm [shape: bf16[8,128], index: 7, kind: output, shape index: {}]
  %s8 = sld [smem:[#allocation0]]
  $region54: #{tpu_custom_call.1} parent=0
    _
  %s10 = ssub.s32 1, %s8
  %s11 = scalar_select 0, %s10, %s8
  $region1: #{tpu_custom_call.1} parent=0
    #allocation2 [shape = 'u8[4096]{0}', space=vmem, size = 0x1000, scoped, tag = 'input window, operand 0, single buffered']
    #allocation3 [shape = 's32[1]{0}', space=sflag, size = 0x4, scoped, tag = 'scoped memory for tpu_custom_call.1']
    #allocation4 [shape = 's32[1]{0}', space=sflag, size = 0x4, scoped, tag = 'scoped memory for tpu_custom_call.1']
    #allocation5 [shape = 'u8[32768]{0}', space=vmem, size = 0x8000, scoped, tag = 'input window, operand 1, single buffered']
    #allocation6 [shape = 's32[1]{0}', space=sflag, size = 0x4, scoped, tag = 'scoped memory for tpu_custom_call.1']
    #allocation7 [shape = 'u8[65536]{0}', space=vmem, size = 0x10000, scoped, tag = 'input window, operand 3, single buffered']
    #allocation8 [shape = 'u8[32768]{0}', space=vmem, size = 0x8000, scoped, tag = 'input window, operand 5, single buffered']
    #allocation9 [shape = 's32[1]{0}', space=sflag, size = 0x4, scoped, tag = 'scoped memory for tpu_custom_call.1']
    #allocation10 [shape = 'u8[2048]{0}', space=vmem, size = 0x800, scoped, tag = 'output window, operand 0, single buffered']
    %12 = vsyncpa [#allocation3], 0
    %13 = vsyncpa [#allocation6], 0
    %14 = vsyncpa [#allocation9], 0
    %15 = vsyncpa [#allocation4], 0
    // Predicated region
    $region2: #{tpu_custom_call.1} parent=1 // pred_check
      _
    $region3: #{tpu_custom_call.1} parent=1 // pred_check_branch
      %17 = sbr.rel (0) target = $region5
    $region4: #{tpu_custom_call.1} parent=1 // pred_region
      %s19 = ssub.s32 128, 128
      %20 = vsyncadd [#allocation3], %s19
      %s22 = sshll.u32 [#allocation2], 4
      %s23 = int_to_ptr.vmem [resolvable:$true] %s22
      %25 = dma.hbm_to_vmem [thread:$0]  %s0, 128, %s23, [#allocation3]
    $region5: #{tpu_custom_call.1} parent=1 // pred_fallthru
      _
    // Predicated region
    $region6: #{tpu_custom_call.1} parent=1 // pred_check
      _
    $region7: #{tpu_custom_call.1} parent=1 // pred_check_branch
      %27 = sbr.rel (0) target = $region9
    $region8: #{tpu_custom_call.1} parent=1 // pred_region
      %s29 = ssub.s32 1024, 1024
      %30 = vsyncadd [#allocation6], %s29
      %s31 = sshll.u32 [#allocation5], 4
      %s32 = int_to_ptr.vmem [resolvable:$true] %s31
      %37 = dma.hbm_to_vmem [thread:$0]  %s1, 1024, %s32, [#allocation6], 128, 128, 8
    $region9: #{tpu_custom_call.1} parent=1 // pred_fallthru
      _
    // Predicated region
    $region10: #{tpu_custom_call.1} parent=1 // pred_check
      _
    $region11: #{tpu_custom_call.1} parent=1 // pred_check_branch
      %39 = sbr.rel (0) target = $region13
    $region12: #{tpu_custom_call.1} parent=1 // pred_region
      _
    $region13: #{tpu_custom_call.1} parent=1 // pred_fallthru
      _
    // Predicated region
    $region14: #{tpu_custom_call.1} parent=1 // pred_check
      _
    $region15: #{tpu_custom_call.1} parent=1 // pred_check_branch
      %41 = sbr.rel (0) target = $region17
    $region16: #{tpu_custom_call.1} parent=1 // pred_region
      %s43 = ssub.s32 2048, 2048
      %44 = vsyncadd [#allocation6], %s43
      %s45 = sshll.u32 [#allocation7], 4
      %s46 = int_to_ptr.vmem [resolvable:$true] %s45
      %51 = dma.hbm_to_vmem [thread:$0]  %s3, 2048, %s46, [#allocation6], 64, 64, 4
    $region17: #{tpu_custom_call.1} parent=1 // pred_fallthru
      _
    // Predicated region
    $region18: #{tpu_custom_call.1} parent=1 // pred_check
      _
    $region19: #{tpu_custom_call.1} parent=1 // pred_check_branch
      %53 = sbr.rel (0) target = $region21
    $region20: #{tpu_custom_call.1} parent=1 // pred_region
      _
    $region21: #{tpu_custom_call.1} parent=1 // pred_fallthru
      _
    // Predicated region
    $region22: #{tpu_custom_call.1} parent=1 // pred_check
      _
    $region23: #{tpu_custom_call.1} parent=1 // pred_check_branch
      %55 = sbr.rel (0) target = $region25
    $region24: #{tpu_custom_call.1} parent=1 // pred_region
      %s57 = ssub.s32 1024, 1024
      %58 = vsyncadd [#allocation9], %s57
      %s59 = sshll.u32 [#allocation8], 4
      %s60 = int_to_ptr.vmem [resolvable:$true] %s59
      %65 = dma.hbm_to_vmem [thread:$0]  %s5, 1024, %s60, [#allocation9], 64, 64, 4
    $region25: #{tpu_custom_call.1} parent=1 // pred_fallthru
      _
    // Predicated region
    $region26: #{tpu_custom_call.1} parent=1 // pred_check
      _
    $region27: #{tpu_custom_call.1} parent=1 // pred_check_branch
      %67 = sbr.rel (0) target = $region29
    $region28: #{tpu_custom_call.1} parent=1 // pred_region
      _
    $region29: #{tpu_custom_call.1} parent=1 // pred_fallthru
      _
    // Predicated region
    $region30: #{tpu_custom_call.1} parent=1 // pred_check
      _
    $region31: #{tpu_custom_call.1} parent=1 // pred_check_branch
      %69 = sbr.rel (0) target = $region33
    $region32: #{tpu_custom_call.1} parent=1 // pred_region
      %70 = dma.done [#allocation3], 128
    $region33: #{tpu_custom_call.1} parent=1 // pred_fallthru
      _
    // Predicated region
    $region34: #{tpu_custom_call.1} parent=1 // pred_check
      _
    $region35: #{tpu_custom_call.1} parent=1 // pred_check_branch
      %72 = sbr.rel (0) target = $region37
    $region36: #{tpu_custom_call.1} parent=1 // pred_region
      %73 = dma.done [#allocation6], 1024
    $region37: #{tpu_custom_call.1} parent=1 // pred_fallthru
      _
    // Predicated region
    $region38: #{tpu_custom_call.1} parent=1 // pred_check
      _
    $region39: #{tpu_custom_call.1} parent=1 // pred_check_branch
      %75 = sbr.rel (0) target = $region41
    $region40: #{tpu_custom_call.1} parent=1 // pred_region
      %76 = dma.done [#allocation6], 2048
    $region41: #{tpu_custom_call.1} parent=1 // pred_fallthru
      _
    // Predicated region
    $region42: #{tpu_custom_call.1} parent=1 // pred_check
      _
    $region43: #{tpu_custom_call.1} parent=1 // pred_check_branch
      %78 = sbr.rel (0) target = $region45
    $region44: #{tpu_custom_call.1} parent=1 // pred_region
      %79 = dma.done [#allocation9], 1024
    $region45: #{tpu_custom_call.1} parent=1 // pred_fallthru
      _
    %v81 = vld [vmem:[#allocation2] sm:$0xff]
    %v82 = vpack.c.bf16 %v81, %v81
    %v83 = vld [vmem:[#allocation5] sm:$0xff]
    %v84 = vld [vmem:[#allocation5 + $0x8] sm:$0xff]
    %v85 = vld [vmem:[#allocation5 + $0x10] sm:$0xff]
    %v86 = vld [vmem:[#allocation5 + $0x18] sm:$0xff]
    %v87 = vld [vmem:[#allocation5 + $0x20] sm:$0xff]
    %v88 = vld [vmem:[#allocation5 + $0x28] sm:$0xff]
    %v89 = vld [vmem:[#allocation5 + $0x30] sm:$0xff]
    %v90 = vld [vmem:[#allocation5 + $0x38] sm:$0xff]
    %v91 = vld [vmem:[%s2] sm:$0x3]
    %v93 = vlaneseq
    %v94 = vshrl.u32 %v93, 7
    %v95 = vsub.s32 0, %v94
    %v96 = vrot.slane %v91, %v95
    %v97 = vlaneseq
    %v98 = vshrl.u32 %v97, 7
    %v99 = vsub.s32 1, %v98
    %v100 = vrot.slane %v91, %v99
    %v111 = vunpack.c.l.b16 %v83
    %v112 = vunpack.c.h.b16 %v83
    %v113 = vunpack.c.l.b16 %v84
    %v114 = vunpack.c.h.b16 %v84
    %v115 = vunpack.c.l.b16 %v85
    %v116 = vunpack.c.h.b16 %v85
    %v117 = vunpack.c.l.b16 %v86
    %v118 = vunpack.c.h.b16 %v86
    %v119 = vunpack.c.l.b16 %v87
    %v120 = vunpack.c.h.b16 %v87
    %v121 = vunpack.c.l.b16 %v88
    %v122 = vunpack.c.h.b16 %v88
    %v123 = vunpack.c.l.b16 %v89
    %v124 = vunpack.c.h.b16 %v89
    %v125 = vunpack.c.l.b16 %v90
    %v126 = vunpack.c.h.b16 %v90
    %v127 = vpack.c.b16 %v113, %v111
    %v128 = vpack.c.b16 %v114, %v112
    %v129 = vpack.c.b16 %v117, %v115
    %v130 = vpack.c.b16 %v118, %v116
    %v131 = vpack.c.b16 %v121, %v119
    %v132 = vpack.c.b16 %v122, %v120
    %v133 = vpack.c.b16 %v125, %v123
    %v134 = vpack.c.b16 %v126, %v124
    %vm143 = vcmask 523264
    %v145 = vsel %vm143, %v82, 0
    %147 = vmatprep.subr.bf16.mxu0 0
    %148 = vmatpush1.bf16.msra.mxu0 0
    %149 = vmatprep.subr.bf16.mxu0 0
    %150 = vmatpush1.bf16.msra.mxu0 0
    %151 = vmatprep.subr.bf16.mxu0 0
    %152 = vmatpush1.bf16.msra.mxu0 0
    %153 = vmatprep.subr.bf16.mxu0 0
    %154 = vmatpush1.bf16.msra.mxu0 0
    %155 = vmatprep.subr.bf16.mxu0 %v134
    %156 = vmatpush1.bf16.msra.mxu0 %v133
    %157 = vmatprep.subr.bf16.mxu0 %v132
    %158 = vmatpush1.bf16.msra.mxu0 %v131
    %159 = vmatprep.subr.bf16.mxu0 %v130
    %160 = vmatpush1.bf16.msra.mxu0 %v129
    %161 = vmatprep.subr.bf16.mxu0 %v128
    %162 = vmatpush1.bf16.msra.mxu0 %v127
    %163 = vmatprep.subr.bf16.mxu0 0
    %164 = vmatpush2.bf16.msra.mxu0 0
    %165 = vmatprep.subr.bf16.mxu0 0
    %166 = vmatpush2.bf16.msra.mxu0 0
    %167 = vmatprep.subr.bf16.mxu0 0
    %168 = vmatpush2.bf16.msra.mxu0 0
    %169 = vmatprep.subr.bf16.mxu0 0
    %170 = vmatpush2.bf16.msra.mxu0 0
    %171 = vmatprep.subr.bf16.mxu0 0
    %172 = vmatpush2.bf16.msra.mxu0 0
    %173 = vmatprep.subr.bf16.mxu0 0
    %174 = vmatpush2.bf16.msra.mxu0 0
    %175 = vmatprep.subr.bf16.mxu0 0
    %176 = vmatpush2.bf16.msra.mxu0 0
    %177 = vmatprep.subr.bf16.mxu0 0
    %178 = vmatpush2.bf16.msra.mxu0 0
    %179 = vmatprep.mubr.bf16.mxu0 0
    %180 = vmatmul.mubr.bf16.gmra.mxu0 %v145
    %v181 = vpop.f32.mrf.mxu0
    %v182 = vadd.f32 %v96, %v181
    %v183 = vpop.f32.mrf.mxu0
    %v184 = vadd.f32 %v100, %v183
    %v185 = vpop.f32.mrf.mxu0
    %v186 = vpop.f32.mrf.mxu0
    %187 = vdwg.mxu0
    %v188 = vmax.f32 %v182, 0.0
    %v189 = vmax.f32 %v184, 0.0
    %v190 = vpack.c.bf16 %v188, %v188
    %v191 = vpack.c.bf16 %v189, %v189
    %v192 = vld [vmem:[#allocation7] sm:$0xf]
    %v193 = vld [vmem:[#allocation7 + $0x4] sm:$0xf]
    %v194 = vld [vmem:[#allocation7 + $0x8] sm:$0xf]
    %v195 = vld [vmem:[#allocation7 + $0xc] sm:$0xf]
    %v196 = vld [vmem:[#allocation7 + $0x10] sm:$0xf]
    %v197 = vld [vmem:[#allocation7 + $0x14] sm:$0xf]
    %v198 = vld [vmem:[#allocation7 + $0x18] sm:$0xf]
    %v199 = vld [vmem:[#allocation7 + $0x1c] sm:$0xf]
    %v200 = vld [vmem:[#allocation7 + $0x20] sm:$0xf]
    %v201 = vld [vmem:[#allocation7 + $0x24] sm:$0xf]
    %v202 = vld [vmem:[#allocation7 + $0x28] sm:$0xf]
    %v203 = vld [vmem:[#allocation7 + $0x2c] sm:$0xf]
    %v204 = vld [vmem:[#allocation7 + $0x30] sm:$0xf]
    %v205 = vld [vmem:[#allocation7 + $0x34] sm:$0xf]
    %v206 = vld [vmem:[#allocation7 + $0x38] sm:$0xf]
    %v207 = vld [vmem:[#allocation7 + $0x3c] sm:$0xf]
    %v208 = vld [vmem:[#allocation7 + $0x40] sm:$0xf]
    %v209 = vld [vmem:[#allocation7 + $0x44] sm:$0xf]
    %v210 = vld [vmem:[#allocation7 + $0x48] sm:$0xf]
    %v211 = vld [vmem:[#allocation7 + $0x4c] sm:$0xf]
    %v212 = vld [vmem:[#allocation7 + $0x50] sm:$0xf]
    %v213 = vld [vmem:[#allocation7 + $0x54] sm:$0xf]
    %v214 = vld [vmem:[#allocation7 + $0x58] sm:$0xf]
    %v215 = vld [vmem:[#allocation7 + $0x5c] sm:$0xf]
    %v216 = vld [vmem:[#allocation7 + $0x60] sm:$0xf]
    %v217 = vld [vmem:[#allocation7 + $0x64] sm:$0xf]
    %v218 = vld [vmem:[#allocation7 + $0x68] sm:$0xf]
    %v219 = vld [vmem:[#allocation7 + $0x6c] sm:$0xf]
    %v220 = vld [vmem:[#allocation7 + $0x70] sm:$0xf]
    %v221 = vld [vmem:[#allocation7 + $0x74] sm:$0xf]
    %v222 = vld [vmem:[#allocation7 + $0x78] sm:$0xf]
    %v223 = vld [vmem:[#allocation7 + $0x7c] sm:$0xf]
    %v224 = vld [vmem:[%s4] sm:$0x1]
    %v226 = vlaneseq
    %v227 = vshrl.u32 %v226, 7
    %v228 = vsub.s32 0, %v227
    %v229 = vrot.slane %v224, %v228
    %v263 = vunpack.c.l.b16 %v192
    %v264 = vunpack.c.l.b16 %v193
    %v265 = vunpack.c.l.b16 %v194
    %v266 = vunpack.c.l.b16 %v195
    %v267 = vunpack.c.l.b16 %v196
    %v268 = vunpack.c.l.b16 %v197
    %v269 = vunpack.c.l.b16 %v198
    %v270 = vunpack.c.l.b16 %v199
    %v271 = vunpack.c.l.b16 %v200
    %v272 = vunpack.c.l.b16 %v201
    %v273 = vunpack.c.l.b16 %v202
    %v274 = vunpack.c.l.b16 %v203
    %v275 = vunpack.c.l.b16 %v204
    %v276 = vunpack.c.l.b16 %v205
    %v277 = vunpack.c.l.b16 %v206
    %v278 = vunpack.c.l.b16 %v207
    %v279 = vunpack.c.l.b16 %v208
    %v280 = vunpack.c.l.b16 %v209
    %v281 = vunpack.c.l.b16 %v210
    %v282 = vunpack.c.l.b16 %v211
    %v283 = vunpack.c.l.b16 %v212
    %v284 = vunpack.c.l.b16 %v213
    %v285 = vunpack.c.l.b16 %v214
    %v286 = vunpack.c.l.b16 %v215
    %v287 = vunpack.c.l.b16 %v216
    %v288 = vunpack.c.l.b16 %v217
    %v289 = vunpack.c.l.b16 %v218
    %v290 = vunpack.c.l.b16 %v219
    %v291 = vunpack.c.l.b16 %v220
    %v292 = vunpack.c.l.b16 %v221
    %v293 = vunpack.c.l.b16 %v222
    %v294 = vunpack.c.l.b16 %v223
    %v295 = vpack.c.b16 %v264, %v263
    %v296 = vpack.c.b16 %v266, %v265
    %v297 = vpack.c.b16 %v268, %v267
    %v298 = vpack.c.b16 %v270, %v269
    %v299 = vpack.c.b16 %v272, %v271
    %v300 = vpack.c.b16 %v274, %v273
    %v301 = vpack.c.b16 %v276, %v275
    %v302 = vpack.c.b16 %v278, %v277
    %v303 = vpack.c.b16 %v280, %v279
    %v304 = vpack.c.b16 %v282, %v281
    %v305 = vpack.c.b16 %v284, %v283
    %v306 = vpack.c.b16 %v286, %v285
    %v307 = vpack.c.b16 %v288, %v287
    %v308 = vpack.c.b16 %v290, %v289
    %v309 = vpack.c.b16 %v292, %v291
    %v310 = vpack.c.b16 %v294, %v293
    %327 = vmatprep.subr.bf16.mxu0 0
    %328 = vmatpush1.bf16.msra.mxu0 %v302
    %329 = vmatprep.subr.bf16.mxu0 0
    %330 = vmatpush1.bf16.msra.mxu0 %v301
    %331 = vmatprep.subr.bf16.mxu0 0
    %332 = vmatpush1.bf16.msra.mxu0 %v300
    %333 = vmatprep.subr.bf16.mxu0 0
    %334 = vmatpush1.bf16.msra.mxu0 %v299
    %335 = vmatprep.subr.bf16.mxu0 0
    %336 = vmatpush1.bf16.msra.mxu0 %v298
    %337 = vmatprep.subr.bf16.mxu0 0
    %338 = vmatpush1.bf16.msra.mxu0 %v297
    %339 = vmatprep.subr.bf16.mxu0 0
    %340 = vmatpush1.bf16.msra.mxu0 %v296
    %341 = vmatprep.subr.bf16.mxu0 0
    %342 = vmatpush1.bf16.msra.mxu0 %v295
    %343 = vmatprep.subr.bf16.mxu0 0
    %344 = vmatpush2.bf16.msra.mxu0 %v310
    %345 = vmatprep.subr.bf16.mxu0 0
    %346 = vmatpush2.bf16.msra.mxu0 %v309
    %347 = vmatprep.subr.bf16.mxu0 0
    %348 = vmatpush2.bf16.msra.mxu0 %v308
    %349 = vmatprep.subr.bf16.mxu0 0
    %350 = vmatpush2.bf16.msra.mxu0 %v307
    %351 = vmatprep.subr.bf16.mxu0 0
    %352 = vmatpush2.bf16.msra.mxu0 %v306
    %353 = vmatprep.subr.bf16.mxu0 0
    %354 = vmatpush2.bf16.msra.mxu0 %v305
    %355 = vmatprep.subr.bf16.mxu0 0
    %356 = vmatpush2.bf16.msra.mxu0 %v304
    %357 = vmatprep.subr.bf16.mxu0 0
    %358 = vmatpush2.bf16.msra.mxu0 %v303
    %359 = vmatprep.mubr.bf16.mxu0 %v191
    %360 = vmatmul.mubr.bf16.gmra.mxu0 %v190
    %v361 = vpop.f32.mrf.mxu0
    %v362 = vadd.f32 %v229, %v361
    %v363 = vpop.f32.mrf.mxu0
    %v364 = vpop.f32.mrf.mxu0
    %v365 = vpop.f32.mrf.mxu0
    %366 = vdwg.mxu0
    %v367 = vmax.f32 %v362, 0.0
    %v368 = vpack.c.bf16 %v367, %v367
    %v369 = vld [vmem:[#allocation8] sm:$0xf]
    %v370 = vld [vmem:[#allocation8 + $0x4] sm:$0xf]
    %v371 = vld [vmem:[#allocation8 + $0x8] sm:$0xf]
    %v372 = vld [vmem:[#allocation8 + $0xc] sm:$0xf]
    %v373 = vld [vmem:[#allocation8 + $0x10] sm:$0xf]
    %v374 = vld [vmem:[#allocation8 + $0x14] sm:$0xf]
    %v375 = vld [vmem:[#allocation8 + $0x18] sm:$0xf]
    %v376 = vld [vmem:[#allocation8 + $0x1c] sm:$0xf]
    %v377 = vld [vmem:[#allocation8 + $0x20] sm:$0xf]
    %v378 = vld [vmem:[#allocation8 + $0x24] sm:$0xf]
    %v379 = vld [vmem:[#allocation8 + $0x28] sm:$0xf]
    %v380 = vld [vmem:[#allocation8 + $0x2c] sm:$0xf]
    %v381 = vld [vmem:[#allocation8 + $0x30] sm:$0xf]
    %v382 = vld [vmem:[#allocation8 + $0x34] sm:$0xf]
    %v383 = vld [vmem:[#allocation8 + $0x38] sm:$0xf]
    %v384 = vld [vmem:[#allocation8 + $0x3c] sm:$0xf]
    %v385 = vld [vmem:[%s6] sm:$0x1]
    %v387 = vlaneseq
    %v388 = vshrl.u32 %v387, 7
    %v389 = vsub.s32 0, %v388
    %v390 = vrot.slane %v385, %v389
    %v408 = vunpack.c.l.b16 %v369
    %v409 = vunpack.c.l.b16 %v370
    %v410 = vunpack.c.l.b16 %v371
    %v411 = vunpack.c.l.b16 %v372
    %v412 = vunpack.c.l.b16 %v373
    %v413 = vunpack.c.l.b16 %v374
    %v414 = vunpack.c.l.b16 %v375
    %v415 = vunpack.c.l.b16 %v376
    %v416 = vunpack.c.l.b16 %v377
    %v417 = vunpack.c.l.b16 %v378
    %v418 = vunpack.c.l.b16 %v379
    %v419 = vunpack.c.l.b16 %v380
    %v420 = vunpack.c.l.b16 %v381
    %v421 = vunpack.c.l.b16 %v382
    %v422 = vunpack.c.l.b16 %v383
    %v423 = vunpack.c.l.b16 %v384
    %v424 = vpack.c.b16 %v409, %v408
    %v425 = vpack.c.b16 %v411, %v410
    %v426 = vpack.c.b16 %v413, %v412
    %v427 = vpack.c.b16 %v415, %v414
    %v428 = vpack.c.b16 %v417, %v416
    %v429 = vpack.c.b16 %v419, %v418
    %v430 = vpack.c.b16 %v421, %v420
    %v431 = vpack.c.b16 %v423, %v422
    %440 = vmatprep.subr.bf16.mxu0 0
    %441 = vmatpush1.bf16.msra.mxu0 %v431
    %442 = vmatprep.subr.bf16.mxu0 0
    %443 = vmatpush1.bf16.msra.mxu0 %v430
    %444 = vmatprep.subr.bf16.mxu0 0
    %445 = vmatpush1.bf16.msra.mxu0 %v429
    %446 = vmatprep.subr.bf16.mxu0 0
    %447 = vmatpush1.bf16.msra.mxu0 %v428
    %448 = vmatprep.subr.bf16.mxu0 0
    %449 = vmatpush1.bf16.msra.mxu0 %v427
    %450 = vmatprep.subr.bf16.mxu0 0
    %451 = vmatpush1.bf16.msra.mxu0 %v426
    %452 = vmatprep.subr.bf16.mxu0 0
    %453 = vmatpush1.bf16.msra.mxu0 %v425
    %454 = vmatprep.subr.bf16.mxu0 0
    %455 = vmatpush1.bf16.msra.mxu0 %v424
    %456 = vmatprep.subr.bf16.mxu0 0
    %457 = vmatpush2.bf16.msra.mxu0 0
    %458 = vmatprep.subr.bf16.mxu0 0
    %459 = vmatpush2.bf16.msra.mxu0 0
    %460 = vmatprep.subr.bf16.mxu0 0
    %461 = vmatpush2.bf16.msra.mxu0 0
    %462 = vmatprep.subr.bf16.mxu0 0
    %463 = vmatpush2.bf16.msra.mxu0 0
    %464 = vmatprep.subr.bf16.mxu0 0
    %465 = vmatpush2.bf16.msra.mxu0 0
    %466 = vmatprep.subr.bf16.mxu0 0
    %467 = vmatpush2.bf16.msra.mxu0 0
    %468 = vmatprep.subr.bf16.mxu0 0
    %469 = vmatpush2.bf16.msra.mxu0 0
    %470 = vmatprep.subr.bf16.mxu0 0
    %471 = vmatpush2.bf16.msra.mxu0 0
    %472 = vmatprep.mubr.bf16.mxu0 0
    %473 = vmatmul.mubr.bf16.gmra.mxu0 %v368
    %v474 = vpop.f32.mrf.mxu0
    %v475 = vadd.f32 %v390, %v474
    %v476 = vpop.f32.mrf.mxu0
    %v477 = vpop.f32.mrf.mxu0
    %v478 = vpop.f32.mrf.mxu0
    %479 = vdwg.mxu0
    %v480 = vlaneseq
    %v481 = vand.u32 %v480, 127
    %vm482 = vcmp.lt.s32.totalorder %v481, 32
    %v483 = vsel %vm482, %v475, -inf
    %484 = vmax.xlane.f32.xlu0 %v483
    %v485 = vpop.xlane.xlu0 %484
    %v486 = vsub.f32 %v483, %v485
    %v487 = vmul.f32 %v486, 1.442695
    %v488 = vpow.pop %v487
    %489 = vadd.xlane.f32.xlu0 %v488
    %v490 = vpop.xlane.xlu0 %489
    %v491 = vrcp.pop %v490
    %v492 = vmul.f32 %v488, %v491
    %v493 = vpack.c.bf16 %v492, %v492
    %494 = vst [vmem:[#allocation10] sm:$0xf] %v493
    // Predicated region
    $region46: #{tpu_custom_call.1} parent=1 // pred_check
      _
    $region47: #{tpu_custom_call.1} parent=1 // pred_check_branch
      %496 = sbr.rel (0) target = $region49
    $region48: #{tpu_custom_call.1} parent=1 // pred_region
      %s498 = ssub.s32 64, 64
      %499 = vsyncadd [#allocation4], %s498
      %s501 = sshll.u32 [#allocation10], 4
      %s502 = int_to_ptr.vmem [resolvable:$true] %s501
      %504 = dma.vmem_to_hbm [thread:$0]  %s502, 64, %s7, [#allocation4]
    $region49: #{tpu_custom_call.1} parent=1 // pred_fallthru
      _
    // Predicated region
    $region50: #{tpu_custom_call.1} parent=1 // pred_check
      _
    $region51: #{tpu_custom_call.1} parent=1 // pred_check_branch
      %506 = sbr.rel (0) target = $region53
    $region52: #{tpu_custom_call.1} parent=1 // pred_region
      %507 = dma.done [#allocation4], 64
    $region53: #{tpu_custom_call.1} parent=1 // pred_fallthru
      _
    %508 = vsyncpa [#allocation3], 1
    %509 = vsyncpa [#allocation6], 1
    %510 = vsyncpa [#allocation9], 1
    %511 = vsyncpa [#allocation4], 1

</llo_original>
